<compile_context>
chip_gen: v7x
topology: tpu7x:2x2x1
jax: 0.10.0
libtpu: 0.0.40
codegen_flags: <defaults>
</compile_context>

<pallas_src>
import functools

import numpy as np
import jax
import jax.numpy as jnp
from jax import lax
from jax.experimental import pallas as pl
from jax.experimental.pallas import tpu as pltpu


# ---------------------------------------------------------------------------
# Helpers: VMEM budget (per TPU generation) and row-tile sizing.
# ---------------------------------------------------------------------------
def _round_up(x, m):
    return (x + m - 1) // m * m


def _vmem_limits():
    """(vmem_limit_bytes for CompilerParams, byte budget used for tile sizing)."""
    try:  # 128 MiB on v5e/v6e, 64 MiB per TensorCore on v7x
        phys = int(pltpu.get_tpu_info().vmem_capacity_bytes)
    except Exception:
        phys = 64 * 1024 * 1024                      # conservative fallback (v7x per-core VMEM)
    limit = min(phys * 3 // 4, 96 * 1024 * 1024)     # v7x -> 48 MiB, v5e/v6e -> 96 MiB
    budget = limit * 3 // 4                          # headroom for outputs / compiler scratch
    return limit, budget


def _choose_block_n(n, c, itemsize, num_experts, budget):
    """Rows per grid step, sized by bytes:
         2 double-buffered native-dtype logits tiles (lane-padded to >=128 lanes)
       + ~3 f32 temporaries of the live tile (upcast, z, exp(z-m))
       + 2 double-buffered lane-padded (block_n, 1) int32 target tiles.
    Multiple of 16 so f32 (8,128) and bf16 (16,128) sublane packings are both legal."""
    lanes = max(128, _round_up(c, 128))
    bytes_per_row = 2 * lanes * itemsize + 3 * lanes * 4 + 2 * 128 * 4
    cap = max(16, (budget // bytes_per_row) // 16 * 16)
    n16 = _round_up(n, 16)
    # Keep >= ~8 total grid steps when N is large (megacore split + DMA/compute overlap),
    # but never shrink tiles below ~512 rows (per-step overhead ~0.35us dominates).
    want_tiles = max(1, 8 // max(1, num_experts))
    split = _round_up(pl.cdiv(n, want_tiles), 16)
    bn = max(min(512, n16), min(split, n16))
    return min(bn, cap, n16)


# ---------------------------------------------------------------------------
# Pallas kernel: per-row logsumexp(adjusted logits) + target-logit gather.
# ---------------------------------------------------------------------------
def _lse_gather_kernel(*refs, has_prior, lane_dense):
    """refs = (logits, targets, class_row[, log_prior], lse_out, zt_out).

    One (1, TN, C) logits tile per grid step, streamed in its native dtype and
    upcast to f32 in VMEM."""
    if has_prior:
        logits_ref, target_ref, cls_ref, logp_ref, lse_ref, zt_ref = refs
    else:
        logits_ref, target_ref, cls_ref, lse_ref, zt_ref = refs

    z = logits_ref[0].astype(jnp.float32)                 # (TN, C) f32 upcast in VMEM
    if has_prior:
        z = z + logp_ref[...]                             # + per-class log prior, (1, C)

    onehot = cls_ref[...] == target_ref[...]               # (1,C) vs (TN,1) -> (TN,C); no iota
    m = jnp.max(z, axis=-1, keepdims=True)                 # stable logsumexp
    lse = m + jnp.log(jnp.sum(jnp.exp(z - m), axis=-1, keepdims=True))   # (TN, 1)
    zt = jnp.sum(jnp.where(onehot, z, 0.0), axis=-1, keepdims=True)      # adjusted z[t], (TN, 1)

    if lane_dense:
        # Lane-dense writeback: transpose the per-row columns to (1, TN) (XLU slot is idle)
        # so stores are full vector stores instead of TN/8 masked vst.msk.
        lse_ref[...] = jnp.transpose(lse).reshape(lse_ref.shape)
        zt_ref[...] = jnp.transpose(zt).reshape(zt_ref.shape)
    else:
        lse_ref[...] = lse.reshape(lse_ref.shape)
        zt_ref[...] = zt.reshape(zt_ref.shape)


_LANE_DENSE_OK = [True]   # flipped off once if the lane-dense store fails to lower


def _run_lse_gather(logits, target2d, cls_row, log_priors, block_n, *, lane_dense):
    e, n, c = logits.shape
    n_tiles = pl.cdiv(n, block_n)
    has_prior = log_priors is not None
    kernel = functools.partial(_lse_gather_kernel, has_prior=has_prior, lane_dense=lane_dense)

    in_specs = [
        pl.BlockSpec((1, block_n, c), lambda ei, ri: (ei, ri, 0)),   # logits tile (native dtype)
        pl.BlockSpec((block_n, 1), lambda ei, ri: (ri, 0)),          # targets column tile
        pl.BlockSpec((1, c), lambda ei, ri: (0, 0)),                 # class-index row (resident)
    ]
    inputs = [logits, target2d, cls_row]
    if has_prior:
        in_specs.append(pl.BlockSpec((1, c), lambda ei, ri: (ei, 0)))  # per-expert log-prior row
        inputs.append(log_priors)

    if lane_dense:
        out_shape = (jax.ShapeDtypeStruct((e, n_tiles, 1, block_n), jnp.float32),
                     jax.ShapeDtypeStruct((e, n_tiles, 1, block_n), jnp.float32))
        out_specs = (pl.BlockSpec((1, 1, 1, block_n), lambda ei, ri: (ei, ri, 0, 0)),
                     pl.BlockSpec((1, 1, 1, block_n), lambda ei, ri: (ei, ri, 0, 0)))
    else:
        out_shape = (jax.ShapeDtypeStruct((e, n_tiles * block_n, 1), jnp.float32),
                     jax.ShapeDtypeStruct((e, n_tiles * block_n, 1), jnp.float32))
        out_specs = (pl.BlockSpec((1, block_n, 1), lambda ei, ri: (ei, ri, 0)),
                     pl.BlockSpec((1, block_n, 1), lambda ei, ri: (ei, ri, 0)))

    vmem_limit, _ = _vmem_limits()
    lse, zt = pl.pallas_call(
        kernel,
        out_shape=out_shape,
        grid_spec=pltpu.PrefetchScalarGridSpec(
            num_scalar_prefetch=0,
            grid=(e, n_tiles),
            in_specs=in_specs,
            out_specs=out_specs),
        compiler_params=pltpu.CompilerParams(
            dimension_semantics=("parallel", "parallel"),   # no carried state -> megacore OK
            vmem_limit_bytes=vmem_limit),
    )(*inputs)

    if lane_dense:
        lse = lse.reshape(e, n_tiles * block_n)[:, :n]
        zt = zt.reshape(e, n_tiles * block_n)[:, :n]
    else:
        lse = lse[:, :n, 0]
        zt = zt[:, :n, 0]
    return lse, zt


def _lse_and_target_logit(logits, target, log_priors=None, *, block_n=None):
    """Streams (E, N, C) (or (N, C)) logits once and returns float32
    (logsumexp(z + logp), (z + logp)[target]) of shape (E, N) (or (N,)).

    No jnp.pad of the logits: the ragged tail is covered by the out-of-range last
    block; its undefined rows land in the padded output slab and are sliced off
    before any reduction."""
    logits = jnp.asarray(logits)
    squeeze = logits.ndim == 2
    if squeeze:
        logits = logits[None]
    e, n, c = logits.shape
    target2d = jnp.asarray(target, jnp.int32).reshape(n, 1)
    cls_row = jnp.arange(c, dtype=jnp.int32).reshape(1, c)
    if log_priors is not None:
        log_priors = jnp.asarray(log_priors, jnp.float32).reshape(e, c)

    if block_n is None:
        _, budget = _vmem_limits()
        block_n = _choose_block_n(n, c, logits.dtype.itemsize, e, budget)

    if _LANE_DENSE_OK[0]:
        try:
            lse, zt = _run_lse_gather(logits, target2d, cls_row, log_priors,
                                      block_n, lane_dense=True)
        except Exception:
            _LANE_DENSE_OK[0] = False     # older toolchain: fall back to column outputs
            lse, zt = _run_lse_gather(logits, target2d, cls_row, log_priors,
                                      block_n, lane_dense=False)
    else:
        lse, zt = _run_lse_gather(logits, target2d, cls_row, log_priors,
                                  block_n, lane_dense=False)
    return (lse[0], zt[0]) if squeeze else (lse, zt)


# ---------------------------------------------------------------------------
# LGLALoss (JAX/Pallas port of the PyTorch module's forward pass)
# ---------------------------------------------------------------------------
class LGLALoss:
    def __init__(self, cls_num_list, num_experts=3, s=30, tau=3.0):
        cls_num = np.asarray(cls_num_list, dtype=np.int64)
        prior_np = cls_num / cls_num.sum()
        self.C = int(cls_num.shape[0])
        self.prior = jnp.asarray(prior_np, jnp.float32)
        self.cls_num_list = jnp.asarray(cls_num, jnp.int32)
        self.s = float(s)
        self.num_experts = int(num_experts)
        self.tau = float(tau) if self.num_experts > 2 else 1.0

        self.mask_cls = []
        if self.num_experts == 2:
            mask_np = [np.ones((self.C,), bool)]
            self.mask_cls.append(jnp.ones((self.C,), jnp.bool_))
            self.region_points = [(0, int(cls_num.max()))]
        else:
            self.region_points = self._get_region_points(cls_num)
            mask_np = []
            for lo, hi in self.region_points:
                m = (cls_num > lo) & (cls_num <= hi)
                mask_np.append(m)
                self.mask_cls.append(jnp.asarray(m))

        # Per-expert log-prior rows (E, C): fully static, precomputed once on host.
        rows = []
        for ind in range(self.num_experts):
            if ind != self.num_experts - 1:
                prior_adj = np.where(mask_np[ind], prior_np, prior_np.max())
                rows.append(np.log(prior_adj + 1e-9))
            else:
                rows.append(np.log(prior_np + 1e-9) * self.tau)
        self.log_priors = jnp.asarray(np.stack(rows), jnp.float32)

    def _get_region_points(self, cls_num):
        region_num = int(cls_num.sum()) // (self.num_experts - 1)
        sort_list = np.sort(cls_num)
        points = []
        now_sum = 0
        for v in sort_list:
            now_sum += int(v)
            if now_sum > region_num:
                points.append(int(v))
                now_sum = 0
        points = list(reversed(points))
        region_left_right = []
        for i, p in enumerate(points):
            if i == 0:
                region_left_right.append((p, int(cls_num.max())))
            else:
                region_left_right.append((p, points[i - 1]))
        region_left_right.append((0, points[-1]))
        return region_left_right

    def _base_cross_entropy(self, logits, target):
        lse, zt = _lse_and_target_logit(logits, target)      # specialized no-prior kernel
        nll = lse - zt
        # F.cross_entropy default: ignore_index=-100 (any invalid target is skipped).
        valid = (target >= 0) & (target < logits.shape[-1])
        denom = jnp.maximum(jnp.sum(valid), 1).astype(jnp.float32)
        return jnp.sum(jnp.where(valid, nll, 0.0)) / denom

    def __call__(self, output_logits, target, extra_info=None):
        target = jnp.asarray(target, jnp.int32)
        if extra_info is None:
            return self._base_cross_entropy(output_logits, target)

        expert_logits = extra_info["logits"]
        if isinstance(expert_logits, (list, tuple)):
            # Per-expert streaming; avoids forcing an HBM stack/copy of the caller's list.
            parts = [
                _lse_and_target_logit(jnp.asarray(expert_logits[i])[None], target,
                                      self.log_priors[i:i + 1])
                for i in range(self.num_experts)
            ]
            lse = jnp.concatenate([p[0] for p in parts], axis=0)     # (E, N), tiny
            zt = jnp.concatenate([p[1] for p in parts], axis=0)
        else:
            # Already contiguous (E, N, C): one fused pallas_call over grid (E, n_tiles).
            lse, zt = _lse_and_target_logit(jnp.asarray(expert_logits), target,
                                            self.log_priors)

        # ----- tiny O(E*N) epilogue in plain JAX -----
        target_num = self.cls_num_list[target]
        masks = [(target_num > lo) & (target_num <= hi) for lo, hi in self.region_points]

        lp_t = self.log_priors[:, target]                    # (E, N) log prior at target
        nll = lse - zt                                        # -log_softmax(z + logp)[t]
        w_raw = zt - lp_t                                     # raw target logit z[t]
        theta = jnp.arccos(lax.stop_gradient(w_raw) / self.s)   # (E, N), no grad (as in PyTorch)
        delta = jnp.zeros_like(theta)
        for i in range(self.num_experts - 1):
            m = masks[i]
            cnt = jnp.maximum(jnp.sum(m), 1).astype(jnp.float32)
            mean_t = jnp.sum(jnp.where(m[None, :], theta, 0.0), axis=1, keepdims=True) / cnt
            delta = jnp.where(m[None, :], theta - mean_t, delta)
        delta = jnp.where(delta < 0.0, 1.0, 1.0 + delta)
        return jnp.sum(jnp.mean(delta * nll, axis=1))


# ---------------------------------------------------------------------------
# Pure-JAX references (mirror the PyTorch module)
# ---------------------------------------------------------------------------
def _ref_cross_entropy(logits, target):
    logp = jax.nn.log_softmax(jnp.asarray(logits, jnp.float32), axis=-1)
    nll = -jnp.take_along_axis(logp, target[:, None].astype(jnp.int32), axis=-1)[:, 0]
    return jnp.mean(nll)


def _ref_lgla(crit, expert_logits_list, target):
    target = jnp.asarray(target, jnp.int32)
    target_num = crit.cls_num_list[target]
    masks = [(target_num > lo) & (target_num <= hi) for lo, hi in crit.region_points]
    loss = jnp.float32(0.0)
    for ind in range(crit.num_experts):
        z = jnp.asarray(expert_logits_list[ind], jnp.float32)
        one_hot = jax.nn.one_hot(target, crit.C, dtype=jnp.float32)
        W = jnp.sum(one_hot * z, axis=1)
        theta = jnp.arccos(W / crit.s)
        delta = jnp.zeros_like(theta)
        for i in range(crit.num_experts - 1):
            m = masks[i]
            mean_t = jnp.sum(jnp.where(m, theta, 0.0)) / jnp.maximum(jnp.sum(m), 1)
            delta = jnp.where(m, theta - mean_t, delta)
        delta = jnp.where(delta < 0.0, 1.0, 1.0 + delta)
        if ind != crit.num_experts - 1:
            prior_adj = jnp.where(crit.mask_cls[ind], crit.prior, jnp.max(crit.prior))
            logp = jnp.log(prior_adj + 1e-9)
        else:
            logp = jnp.log(crit.prior + 1e-9) * crit.tau
        logsm = jax.nn.log_softmax(z + logp, axis=1)
        loss = loss + (-jnp.mean(jnp.sum(logsm * one_hot, axis=1) * delta))
    return loss


if __name__ == "__main__":
    key = jax.random.PRNGKey(0)
    # N deliberately NOT a tile multiple: exercises the no-pad ragged-tail handling.
    N, C, E = 100, 32, 3

    # synthetic long-tailed class counts
    cls_num_list = [max(1, int(1000 * (0.85 ** i))) for i in range(C)]
    crit = LGLALoss(cls_num_list, num_experts=E, s=30, tau=3.0)

    k1, k2 = jax.random.split(key)
    expert_logits = jax.random.normal(k1, (E, N, C), dtype=jnp.float32) * 2.0
    target = jax.random.randint(k2, (N,), 0, C, dtype=jnp.int32)
    output_logits = jnp.mean(expert_logits, axis=0)

    # 1) base path (extra_info=None): plain cross entropy (specialized no-prior kernel)
    loss_base = crit(output_logits, target)
    jax.block_until_ready(loss_base)
    ref_base = _ref_cross_entropy(output_logits, target)
    np.testing.assert_allclose(np.array(loss_base), np.array(ref_base), rtol=1e-5, atol=1e-5)

    # 2) full LGLA path with the experts pre-stacked as one contiguous (E, N, C) array
    #    -> a single fused pallas_call over grid (E, n_tiles)
    loss_full = crit(output_logits, target, extra_info={"logits": expert_logits})
    jax.block_until_ready(loss_full)
    ref_full = _ref_lgla(crit, [expert_logits[i] for i in range(E)], target)
    np.testing.assert_allclose(np.array(loss_full), np.array(ref_full), rtol=1e-4, atol=1e-4)

    # 3) same path with a Python list of per-expert logits (no forced HBM stack/copy)
    extra_list = {"logits": [expert_logits[i] for i in range(E)]}
    loss_list = crit(output_logits, target, extra_info=extra_list)
    jax.block_until_ready(loss_list)
    np.testing.assert_allclose(np.array(loss_list), np.array(ref_full), rtol=1e-4, atol=1e-4)

    # 4) bf16 logits stream through the kernel at native width (no wrapper upcast)
    logits_bf16 = output_logits.astype(jnp.bfloat16)
    loss_bf16 = crit(logits_bf16, target)
    jax.block_until_ready(loss_bf16)
    ref_bf16 = _ref_cross_entropy(logits_bf16.astype(jnp.float32), target)
    np.testing.assert_allclose(np.array(loss_bf16), np.array(ref_bf16), rtol=1e-4, atol=1e-4)

    print("KERNEL_OK")
</pallas_src>

<mosaic_0001>
module attributes {stable_mosaic.version = 11 : i64} {
  func.func @_lse_gather_kernel(%arg0: i32, %arg1: i32, %arg2: memref<1x112x32xf32, #tpu.memory_space<vmem>>, %arg3: memref<112x1xi32, #tpu.memory_space<vmem>>, %arg4: memref<1x32xi32, #tpu.memory_space<vmem>>, %arg5: memref<1x1x1x112xf32, #tpu.memory_space<vmem>>, %arg6: memref<1x1x1x112xf32, #tpu.memory_space<vmem>>) attributes {dimension_semantics = [#tpu.dimension_semantics<parallel>, #tpu.dimension_semantics<parallel>], iteration_bounds = array<i64: 1, 1>, scalar_prefetch = 0 : i64, scratch_operands = 0 : i64, tpu.core_type = #tpu.core_type<tc>, window_params = [{transform_indices = @transform_0, window_bounds = array<i64: 1, 112, 32>}, {transform_indices = @transform_1, window_bounds = array<i64: 112, 1>}, {pipeline_mode = #tpu.pipeline_mode<synchronous>, transform_indices = @transform_2, window_bounds = array<i64: 1, 32>}, {transform_indices = @transform_3, window_bounds = array<i64: 1, 1, 1, 112>}, {transform_indices = @transform_4, window_bounds = array<i64: 1, 1, 1, 112>}]} {
    %c0 = arith.constant 0 : index
    %c0_0 = arith.constant 0 : index
    %c0_1 = arith.constant 0 : index
    %0 = vector.load %arg2[%c0, %c0_0, %c0_1] : memref<1x112x32xf32, #tpu.memory_space<vmem>>, vector<1x112x32xf32>
    %1 = vector.shape_cast %0 : vector<1x112x32xf32> to vector<112x32xf32>
    %c0_2 = arith.constant 0 : index
    %c0_3 = arith.constant 0 : index
    %2 = vector.load %arg4[%c0_2, %c0_3] : memref<1x32xi32, #tpu.memory_space<vmem>>, vector<1x32xi32>
    %c0_4 = arith.constant 0 : index
    %c0_5 = arith.constant 0 : index
    %3 = vector.load %arg3[%c0_4, %c0_5] : memref<112x1xi32, #tpu.memory_space<vmem>>, vector<112x1xi32>
    %4 = vector.broadcast %2 : vector<1x32xi32> to vector<112x32xi32>
    %5 = vector.broadcast %3 : vector<112x1xi32> to vector<112x32xi32>
    %6 = arith.cmpi eq, %4, %5 : vector<112x32xi32>
    %cst = arith.constant dense<0xFF800000> : vector<112xf32>
    %7 = vector.multi_reduction <maximumf>, %1, %cst [1] : vector<112x32xf32> to vector<112xf32>
    %8 = vector.shape_cast %7 : vector<112xf32> to vector<112x1xf32>
    %9 = vector.broadcast %8 : vector<112x1xf32> to vector<112x32xf32>
    %10 = arith.subf %1, %9 : vector<112x32xf32>
    %11 = math.exp %10 : vector<112x32xf32>
    %cst_6 = arith.constant dense<0.000000e+00> : vector<112xf32>
    %12 = vector.multi_reduction <add>, %11, %cst_6 [1] : vector<112x32xf32> to vector<112xf32>
    %13 = vector.shape_cast %12 : vector<112xf32> to vector<112x1xf32>
    %14 = math.log %13 : vector<112x1xf32>
    %15 = arith.addf %8, %14 : vector<112x1xf32>
    %cst_7 = arith.constant 0.000000e+00 : f32
    %16 = vector.broadcast %cst_7 : f32 to vector<112x32xf32>
    %17 = arith.select %6, %1, %16 : vector<112x32xi1>, vector<112x32xf32>
    %cst_8 = arith.constant dense<0.000000e+00> : vector<112xf32>
    %18 = vector.multi_reduction <add>, %17, %cst_8 [1] : vector<112x32xf32> to vector<112xf32>
    %19 = vector.shape_cast %18 : vector<112xf32> to vector<112x1xf32>
    %20 = tpu.transpose %15, [1, 0] : vector<112x1xf32> -> vector<1x112xf32>
    %21 = vector.shape_cast %20 : vector<1x112xf32> to vector<1x1x1x112xf32>
    %c0_9 = arith.constant 0 : index
    %c0_10 = arith.constant 0 : index
    %c0_11 = arith.constant 0 : index
    %c0_12 = arith.constant 0 : index
    %22 = vector.load %arg5[%c0_9, %c0_10, %c0_11, %c0_12] : memref<1x1x1x112xf32, #tpu.memory_space<vmem>>, vector<1x1x1x112xf32>
    tpu.vector_store %arg5[%c0_9, %c0_10, %c0_11, %c0_12], %21 {strides = array<i32>} : memref<1x1x1x112xf32, #tpu.memory_space<vmem>>, vector<1x1x1x112xf32>,
    %23 = tpu.transpose %19, [1, 0] : vector<112x1xf32> -> vector<1x112xf32>
    %24 = vector.shape_cast %23 : vector<1x112xf32> to vector<1x1x1x112xf32>
    %c0_13 = arith.constant 0 : index
    %c0_14 = arith.constant 0 : index
    %c0_15 = arith.constant 0 : index
    %c0_16 = arith.constant 0 : index
    %25 = vector.load %arg6[%c0_13, %c0_14, %c0_15, %c0_16] : memref<1x1x1x112xf32, #tpu.memory_space<vmem>>, vector<1x1x1x112xf32>
    tpu.vector_store %arg6[%c0_13, %c0_14, %c0_15, %c0_16], %24 {strides = array<i32>} : memref<1x1x1x112xf32, #tpu.memory_space<vmem>>, vector<1x1x1x112xf32>,
    return
  }
  func.func @transform_0(%arg0: i32, %arg1: i32) -> (i32, i32, i32) {
    %c0_i32 = arith.constant 0 : i32
    %c0_i32_0 = arith.constant 0 : i32
    return %arg0, %arg1, %c0_i32 : i32, i32, i32
  }
  func.func @transform_1(%arg0: i32, %arg1: i32) -> (i32, i32) {
    %c0_i32 = arith.constant 0 : i32
    %c0_i32_0 = arith.constant 0 : i32
    return %arg1, %c0_i32 : i32, i32
  }
  func.func @transform_2(%arg0: i32, %arg1: i32) -> (i32, i32) {
    %c0_i32 = arith.constant 0 : i32
    %c0_i32_0 = arith.constant 0 : i32
    %c0_i32_1 = arith.constant 0 : i32
    return %c0_i32, %c0_i32_0 : i32, i32
  }
  func.func @transform_3(%arg0: i32, %arg1: i32) -> (i32, i32, i32, i32) {
    %c0_i32 = arith.constant 0 : i32
    %c0_i32_0 = arith.constant 0 : i32
    %c0_i32_1 = arith.constant 0 : i32
    return %arg0, %arg1, %c0_i32, %c0_i32_0 : i32, i32, i32, i32
  }
  func.func @transform_4(%arg0: i32, %arg1: i32) -> (i32, i32, i32, i32) {
    %c0_i32 = arith.constant 0 : i32
    %c0_i32_0 = arith.constant 0 : i32
    %c0_i32_1 = arith.constant 0 : i32
    return %arg0, %arg1, %c0_i32, %c0_i32_0 : i32, i32, i32, i32
  }
}

module attributes {stable_mosaic.version = 11 : i64} {
  func.func @_lse_gather_kernel(%arg0: i32, %arg1: i32, %arg2: memref<1x112x32xf32, #tpu.memory_space<vmem>>, %arg3: memref<112x1xi32, #tpu.memory_space<vmem>>, %arg4: memref<1x32xi32, #tpu.memory_space<vmem>>, %arg5: memref<1x112x1xf32, #tpu.memory_space<vmem>>, %arg6: memref<1x112x1xf32, #tpu.memory_space<vmem>>) attributes {dimension_semantics = [#tpu.dimension_semantics<parallel>, #tpu.dimension_semantics<parallel>], iteration_bounds = array<i64: 1, 1>, scalar_prefetch = 0 : i64, scratch_operands = 0 : i64, tpu.core_type = #tpu.core_type<tc>, window_params = [{transform_indices = @transform_0, window_bounds = array<i64: 1, 112, 32>}, {transform_indices = @transform_1, window_bounds = array<i64: 112, 1>}, {pipeline_mode = #tpu.pipeline_mode<synchronous>, transform_indices = @transform_2, window_bounds = array<i64: 1, 32>}, {transform_indices = @transform_3, window_bounds = array<i64: 1, 112, 1>}, {transform_indices = @transform_4, window_bounds = array<i64: 1, 112, 1>}]} {
    %c0 = arith.constant 0 : index
    %c0_0 = arith.constant 0 : index
    %c0_1 = arith.constant 0 : index
    %0 = vector.load %arg2[%c0, %c0_0, %c0_1] : memref<1x112x32xf32, #tpu.memory_space<vmem>>, vector<1x112x32xf32>
    %1 = vector.shape_cast %0 : vector<1x112x32xf32> to vector<112x32xf32>
    %c0_2 = arith.constant 0 : index
    %c0_3 = arith.constant 0 : index
    %2 = vector.load %arg4[%c0_2, %c0_3] : memref<1x32xi32, #tpu.memory_space<vmem>>, vector<1x32xi32>
    %c0_4 = arith.constant 0 : index
    %c0_5 = arith.constant 0 : index
    %3 = vector.load %arg3[%c0_4, %c0_5] : memref<112x1xi32, #tpu.memory_space<vmem>>, vector<112x1xi32>
    %4 = vector.broadcast %2 : vector<1x32xi32> to vector<112x32xi32>
    %5 = vector.broadcast %3 : vector<112x1xi32> to vector<112x32xi32>
    %6 = arith.cmpi eq, %4, %5 : vector<112x32xi32>
    %cst = arith.constant dense<0xFF800000> : vector<112xf32>
    %7 = vector.multi_reduction <maximumf>, %1, %cst [1] : vector<112x32xf32> to vector<112xf32>
    %8 = vector.shape_cast %7 : vector<112xf32> to vector<112x1xf32>
    %9 = vector.broadcast %8 : vector<112x1xf32> to vector<112x32xf32>
    %10 = arith.subf %1, %9 : vector<112x32xf32>
    %11 = math.exp %10 : vector<112x32xf32>
    %cst_6 = arith.constant dense<0.000000e+00> : vector<112xf32>
    %12 = vector.multi_reduction <add>, %11, %cst_6 [1] : vector<112x32xf32> to vector<112xf32>
    %13 = vector.shape_cast %12 : vector<112xf32> to vector<112x1xf32>
    %14 = math.log %13 : vector<112x1xf32>
    %15 = arith.addf %8, %14 : vector<112x1xf32>
    %cst_7 = arith.constant 0.000000e+00 : f32
    %16 = vector.broadcast %cst_7 : f32 to vector<112x32xf32>
    %17 = arith.select %6, %1, %16 : vector<112x32xi1>, vector<112x32xf32>
    %cst_8 = arith.constant dense<0.000000e+00> : vector<112xf32>
    %18 = vector.multi_reduction <add>, %17, %cst_8 [1] : vector<112x32xf32> to vector<112xf32>
    %19 = vector.shape_cast %18 : vector<112xf32> to vector<112x1xf32>
    %20 = vector.shape_cast %15 : vector<112x1xf32> to vector<1x112x1xf32>
    %c0_9 = arith.constant 0 : index
    %c0_10 = arith.constant 0 : index
    %c0_11 = arith.constant 0 : index
    %21 = vector.load %arg5[%c0_9, %c0_10, %c0_11] : memref<1x112x1xf32, #tpu.memory_space<vmem>>, vector<1x112x1xf32>
    tpu.vector_store %arg5[%c0_9, %c0_10, %c0_11], %20 {strides = array<i32>} : memref<1x112x1xf32, #tpu.memory_space<vmem>>, vector<1x112x1xf32>,
    %22 = vector.shape_cast %19 : vector<112x1xf32> to vector<1x112x1xf32>
    %c0_12 = arith.constant 0 : index
    %c0_13 = arith.constant 0 : index
    %c0_14 = arith.constant 0 : index
    %23 = vector.load %arg6[%c0_12, %c0_13, %c0_14] : memref<1x112x1xf32, #tpu.memory_space<vmem>>, vector<1x112x1xf32>
    tpu.vector_store %arg6[%c0_12, %c0_13, %c0_14], %22 {strides = array<i32>} : memref<1x112x1xf32, #tpu.memory_space<vmem>>, vector<1x112x1xf32>,
    return
  }
  func.func @transform_0(%arg0: i32, %arg1: i32) -> (i32, i32, i32) {
    %c0_i32 = arith.constant 0 : i32
    %c0_i32_0 = arith.constant 0 : i32
    return %arg0, %arg1, %c0_i32 : i32, i32, i32
  }
  func.func @transform_1(%arg0: i32, %arg1: i32) -> (i32, i32) {
    %c0_i32 = arith.constant 0 : i32
    %c0_i32_0 = arith.constant 0 : i32
    return %arg1, %c0_i32 : i32, i32
  }
  func.func @transform_2(%arg0: i32, %arg1: i32) -> (i32, i32) {
    %c0_i32 = arith.constant 0 : i32
    %c0_i32_0 = arith.constant 0 : i32
    %c0_i32_1 = arith.constant 0 : i32
    return %c0_i32, %c0_i32_0 : i32, i32
  }
  func.func @transform_3(%arg0: i32, %arg1: i32) -> (i32, i32, i32) {
    %c0_i32 = arith.constant 0 : i32
    %c0_i32_0 = arith.constant 0 : i32
    return %arg0, %arg1, %c0_i32 : i32, i32, i32
  }
  func.func @transform_4(%arg0: i32, %arg1: i32) -> (i32, i32, i32) {
    %c0_i32 = arith.constant 0 : i32
    %c0_i32_0 = arith.constant 0 : i32
    return %arg0, %arg1, %c0_i32 : i32, i32, i32
  }
}

</mosaic_0001>

<llo_original>
// kernel: tpu_custom_call.1
$region0: #{tpu_custom_call.1}
  #allocation0 [shape = 'u32[]', space=smem, size = 0x4, offset = 0x4, fixed_abs, tag = 'smem constant byte address 0x4 - core index']
  #allocation1 [shape = 'u32[144,128]{1,0:T(1,128)}', space=vmem, size = 0x12000, scoped, tag = 'internal scratch']
  %s0 = inlined_call_operand.vmem [shape: f32[1,100,32], index: 0, kind: input, shape index: {}]
  %s1 = inlined_call_operand.vmem [shape: s32[100,1], index: 1, kind: input, shape index: {}]
  %s2 = inlined_call_operand.vmem [shape: s32[1,32], index: 2, kind: input, shape index: {}]
  %s3 = inlined_call_operand.hbm [shape: f32[1,1,1,112], index: 3, kind: output, shape index: {0}]
  %s4 = inlined_call_operand.hbm [shape: f32[1,1,1,112], index: 4, kind: output, shape index: {1}]
  %5 = xla_tuple %s3, %s4
  %s6 = sld [smem:[#allocation0]]
  $region30: #{tpu_custom_call.1} parent=0
    _
  %s8 = ssub.s32 1, %s6
  %s9 = scalar_select 0, %s8, %s6
  $region1: #{tpu_custom_call.1} parent=0
    #allocation2 [shape = 'u8[512]{0}', space=vmem, size = 0x400, scoped, tag = 'output window, operand 0, single buffered']
    #allocation3 [shape = 's32[1]{0}', space=sflag, size = 0x4, scoped, tag = 'scoped memory for tpu_custom_call.1']
    #allocation4 [shape = 'u8[512]{0}', space=vmem, size = 0x400, scoped, tag = 'output window, operand 1, single buffered']
    #allocation5 [shape = 's32[1]{0}', space=sflag, size = 0x4, scoped, tag = 'scoped memory for tpu_custom_call.1']
    %10 = vsyncpa [#allocation3], 0
    %11 = vsyncpa [#allocation5], 0
    // Predicated region
    $region2: #{tpu_custom_call.1} parent=1 // pred_check
      _
    $region3: #{tpu_custom_call.1} parent=1 // pred_check_branch
      %13 = sbr.rel (0) target = $region5
    $region4: #{tpu_custom_call.1} parent=1 // pred_region
      _
    $region5: #{tpu_custom_call.1} parent=1 // pred_fallthru
      _
    // Predicated region
    $region6: #{tpu_custom_call.1} parent=1 // pred_check
      _
    $region7: #{tpu_custom_call.1} parent=1 // pred_check_branch
      %15 = sbr.rel (0) target = $region9
    $region8: #{tpu_custom_call.1} parent=1 // pred_region
      _
    $region9: #{tpu_custom_call.1} parent=1 // pred_fallthru
      _
    // Predicated region
    $region10: #{tpu_custom_call.1} parent=1 // pred_check
      _
    $region11: #{tpu_custom_call.1} parent=1 // pred_check_branch
      %17 = sbr.rel (0) target = $region13
    $region12: #{tpu_custom_call.1} parent=1 // pred_region
      _
    $region13: #{tpu_custom_call.1} parent=1 // pred_fallthru
      _
    %v18 = vld [vmem:[%s0] sm:$0xff]
    %v19 = vld [vmem:[%s0 + $0x8] sm:$0xff]
    %v20 = vld [vmem:[%s0 + $0x10] sm:$0xff]
    %v21 = vld [vmem:[%s0 + $0x18] sm:$0xff]
    %v22 = vld [vmem:[%s0 + $0x20] sm:$0xff]
    %v23 = vld [vmem:[%s0 + $0x28] sm:$0xff]
    %v24 = vld [vmem:[%s0 + $0x30] sm:$0xff]
    %v25 = vld [vmem:[%s0 + $0x38] sm:$0xff]
    %v26 = vld [vmem:[%s0 + $0x40] sm:$0xff]
    %v27 = vld [vmem:[%s0 + $0x48] sm:$0xff]
    %v28 = vld [vmem:[%s0 + $0x50] sm:$0xff]
    %v29 = vld [vmem:[%s0 + $0x58] sm:$0xff]
    %v30 = vld [vmem:[%s0 + $0x60] sm:$0xff]
    %v31 = vld [vmem:[%s0 + $0x68] sm:$0xff]
    %v32 = vld [vmem:[%s2] sm:$0x1]
    %v33 = vld [vmem:[%s1] sm:$0xff]
    %v34 = vld [vmem:[%s1 + $0x8] sm:$0xff]
    %v35 = vld [vmem:[%s1 + $0x10] sm:$0xff]
    %v36 = vld [vmem:[%s1 + $0x18] sm:$0xff]
    %v37 = vld [vmem:[%s1 + $0x20] sm:$0xff]
    %v38 = vld [vmem:[%s1 + $0x28] sm:$0xff]
    %v39 = vld [vmem:[%s1 + $0x30] sm:$0xff]
    %v40 = vld [vmem:[%s1 + $0x38] sm:$0xff]
    %v41 = vld [vmem:[%s1 + $0x40] sm:$0xff]
    %v42 = vld [vmem:[%s1 + $0x48] sm:$0xff]
    %v43 = vld [vmem:[%s1 + $0x50] sm:$0xff]
    %v44 = vld [vmem:[%s1 + $0x58] sm:$0xff]
    %v45 = vld [vmem:[%s1 + $0x60] sm:$0xff]
    %v46 = vld [vmem:[%s1 + $0x68] sm:$0xff]
    %v47 = vlaneseq
    %v48 = vshrl.u32 %v47, 7
    %v49 = vsub.s32 0, %v48
    %v50 = vrot.slane %v32, %v49
    %51 = vset.pattern.permute.xlu0 0
    %52 = vperm.xlu0 %51, %v33
    %v53 = vpop.permute.xlu0 %52
    %54 = vset.pattern.permute.xlu0 0
    %55 = vperm.xlu0 %54, %v34
    %v56 = vpop.permute.xlu0 %55
    %57 = vset.pattern.permute.xlu0 0
    %58 = vperm.xlu0 %57, %v35
    %v59 = vpop.permute.xlu0 %58
    %60 = vset.pattern.permute.xlu0 0
    %61 = vperm.xlu0 %60, %v36
    %v62 = vpop.permute.xlu0 %61
    %63 = vset.pattern.permute.xlu0 0
    %64 = vperm.xlu0 %63, %v37
    %v65 = vpop.permute.xlu0 %64
    %66 = vset.pattern.permute.xlu0 0
    %67 = vperm.xlu0 %66, %v38
    %v68 = vpop.permute.xlu0 %67
    %69 = vset.pattern.permute.xlu0 0
    %70 = vperm.xlu0 %69, %v39
    %v71 = vpop.permute.xlu0 %70
    %72 = vset.pattern.permute.xlu0 0
    %73 = vperm.xlu0 %72, %v40
    %v74 = vpop.permute.xlu0 %73
    %75 = vset.pattern.permute.xlu0 0
    %76 = vperm.xlu0 %75, %v41
    %v77 = vpop.permute.xlu0 %76
    %78 = vset.pattern.permute.xlu0 0
    %79 = vperm.xlu0 %78, %v42
    %v80 = vpop.permute.xlu0 %79
    %81 = vset.pattern.permute.xlu0 0
    %82 = vperm.xlu0 %81, %v43
    %v83 = vpop.permute.xlu0 %82
    %84 = vset.pattern.permute.xlu0 0
    %85 = vperm.xlu0 %84, %v44
    %v86 = vpop.permute.xlu0 %85
    %87 = vset.pattern.permute.xlu0 0
    %88 = vperm.xlu0 %87, %v45
    %v89 = vpop.permute.xlu0 %88
    %90 = vset.pattern.permute.xlu0 0
    %91 = vperm.xlu0 %90, %v46
    %v92 = vpop.permute.xlu0 %91
    %vm93 = vcmp.eq.s32.totalorder %v50, %v53
    %vm94 = vcmp.eq.s32.totalorder %v50, %v56
    %vm95 = vcmp.eq.s32.totalorder %v50, %v59
    %vm96 = vcmp.eq.s32.totalorder %v50, %v62
    %vm97 = vcmp.eq.s32.totalorder %v50, %v65
    %vm98 = vcmp.eq.s32.totalorder %v50, %v68
    %vm99 = vcmp.eq.s32.totalorder %v50, %v71
    %vm100 = vcmp.eq.s32.totalorder %v50, %v74
    %vm101 = vcmp.eq.s32.totalorder %v50, %v77
    %vm102 = vcmp.eq.s32.totalorder %v50, %v80
    %vm103 = vcmp.eq.s32.totalorder %v50, %v83
    %vm104 = vcmp.eq.s32.totalorder %v50, %v86
    %vm105 = vcmp.eq.s32.totalorder %v50, %v89
    %vm106 = vcmp.eq.s32.totalorder %v50, %v92
    %vm107 = vcmask 261120
    %v108 = vsel %vm107, %v18, -inf
    %109 = vmax.xlane.f32.xlu0 %v108
    %v110 = vpop.xlane.xlu0 %109
    %v111 = vsel %vm107, %v19, -inf
    %112 = vmax.xlane.f32.xlu0 %v111
    %v113 = vpop.xlane.xlu0 %112
    %v114 = vsel %vm107, %v20, -inf
    %115 = vmax.xlane.f32.xlu0 %v114
    %v116 = vpop.xlane.xlu0 %115
    %v117 = vsel %vm107, %v21, -inf
    %118 = vmax.xlane.f32.xlu0 %v117
    %v119 = vpop.xlane.xlu0 %118
    %v120 = vsel %vm107, %v22, -inf
    %121 = vmax.xlane.f32.xlu0 %v120
    %v122 = vpop.xlane.xlu0 %121
    %v123 = vsel %vm107, %v23, -inf
    %124 = vmax.xlane.f32.xlu0 %v123
    %v125 = vpop.xlane.xlu0 %124
    %v126 = vsel %vm107, %v24, -inf
    %127 = vmax.xlane.f32.xlu0 %v126
    %v128 = vpop.xlane.xlu0 %127
    %v129 = vsel %vm107, %v25, -inf
    %130 = vmax.xlane.f32.xlu0 %v129
    %v131 = vpop.xlane.xlu0 %130
    %v132 = vsel %vm107, %v26, -inf
    %133 = vmax.xlane.f32.xlu0 %v132
    %v134 = vpop.xlane.xlu0 %133
    %v135 = vsel %vm107, %v27, -inf
    %136 = vmax.xlane.f32.xlu0 %v135
    %v137 = vpop.xlane.xlu0 %136
    %v138 = vsel %vm107, %v28, -inf
    %139 = vmax.xlane.f32.xlu0 %v138
    %v140 = vpop.xlane.xlu0 %139
    %v141 = vsel %vm107, %v29, -inf
    %142 = vmax.xlane.f32.xlu0 %v141
    %v143 = vpop.xlane.xlu0 %142
    %v144 = vsel %vm107, %v30, -inf
    %145 = vmax.xlane.f32.xlu0 %v144
    %v146 = vpop.xlane.xlu0 %145
    %v147 = vsel %vm107, %v31, -inf
    %148 = vmax.xlane.f32.xlu0 %v147
    %v149 = vpop.xlane.xlu0 %148
    %v150 = vsub.f32 %v18, %v110
    %v151 = vsub.f32 %v19, %v113
    %v152 = vsub.f32 %v20, %v116
    %v153 = vsub.f32 %v21, %v119
    %v154 = vsub.f32 %v22, %v122
    %v155 = vsub.f32 %v23, %v125
    %v156 = vsub.f32 %v24, %v128
    %v157 = vsub.f32 %v25, %v131
    %v158 = vsub.f32 %v26, %v134
    %v159 = vsub.f32 %v27, %v137
    %v160 = vsub.f32 %v28, %v140
    %v161 = vsub.f32 %v29, %v143
    %v162 = vsub.f32 %v30, %v146
    %v163 = vsub.f32 %v31, %v149
    %v164 = vmul.f32 %v150, 1.442695
    %v165 = vpow.pop %v164
    %v166 = vmul.f32 %v151, 1.442695
    %v167 = vpow.pop %v166
    %v168 = vmul.f32 %v152, 1.442695
    %v169 = vpow.pop %v168
    %v170 = vmul.f32 %v153, 1.442695
    %v171 = vpow.pop %v170
    %v172 = vmul.f32 %v154, 1.442695
    %v173 = vpow.pop %v172
    %v174 = vmul.f32 %v155, 1.442695
    %v175 = vpow.pop %v174
    %v176 = vmul.f32 %v156, 1.442695
    %v177 = vpow.pop %v176
    %v178 = vmul.f32 %v157, 1.442695
    %v179 = vpow.pop %v178
    %v180 = vmul.f32 %v158, 1.442695
    %v181 = vpow.pop %v180
    %v182 = vmul.f32 %v159, 1.442695
    %v183 = vpow.pop %v182
    %v184 = vmul.f32 %v160, 1.442695
    %v185 = vpow.pop %v184
    %v186 = vmul.f32 %v161, 1.442695
    %v187 = vpow.pop %v186
    %v188 = vmul.f32 %v162, 1.442695
    %v189 = vpow.pop %v188
    %v190 = vmul.f32 %v163, 1.442695
    %v191 = vpow.pop %v190
    %v192 = vsel %vm107, %v165, 0.0
    %193 = vadd.xlane.f32.xlu0 %v192
    %v194 = vpop.xlane.xlu0 %193
    %v195 = vsel %vm107, %v167, 0.0
    %196 = vadd.xlane.f32.xlu0 %v195
    %v197 = vpop.xlane.xlu0 %196
    %v198 = vsel %vm107, %v169, 0.0
    %199 = vadd.xlane.f32.xlu0 %v198
    %v200 = vpop.xlane.xlu0 %199
    %v201 = vsel %vm107, %v171, 0.0
    %202 = vadd.xlane.f32.xlu0 %v201
    %v203 = vpop.xlane.xlu0 %202
    %v204 = vsel %vm107, %v173, 0.0
    %205 = vadd.xlane.f32.xlu0 %v204
    %v206 = vpop.xlane.xlu0 %205
    %v207 = vsel %vm107, %v175, 0.0
    %208 = vadd.xlane.f32.xlu0 %v207
    %v209 = vpop.xlane.xlu0 %208
    %v210 = vsel %vm107, %v177, 0.0
    %211 = vadd.xlane.f32.xlu0 %v210
    %v212 = vpop.xlane.xlu0 %211
    %v213 = vsel %vm107, %v179, 0.0
    %214 = vadd.xlane.f32.xlu0 %v213
    %v215 = vpop.xlane.xlu0 %214
    %v216 = vsel %vm107, %v181, 0.0
    %217 = vadd.xlane.f32.xlu0 %v216
    %v218 = vpop.xlane.xlu0 %217
    %v219 = vsel %vm107, %v183, 0.0
    %220 = vadd.xlane.f32.xlu0 %v219
    %v221 = vpop.xlane.xlu0 %220
    %v222 = vsel %vm107, %v185, 0.0
    %223 = vadd.xlane.f32.xlu0 %v222
    %v224 = vpop.xlane.xlu0 %223
    %v225 = vsel %vm107, %v187, 0.0
    %226 = vadd.xlane.f32.xlu0 %v225
    %v227 = vpop.xlane.xlu0 %226
    %v228 = vsel %vm107, %v189, 0.0
    %229 = vadd.xlane.f32.xlu0 %v228
    %v230 = vpop.xlane.xlu0 %229
    %v231 = vsel %vm107, %v191, 0.0
    %232 = vadd.xlane.f32.xlu0 %v231
    %v233 = vpop.xlane.xlu0 %232
    %v234 = vlog2.pop %v194
    %v235 = vmul.f32 %v234, 0.6931472
    %v236 = vlog2.pop %v197
    %v237 = vmul.f32 %v236, 0.6931472
    %v238 = vlog2.pop %v200
    %v239 = vmul.f32 %v238, 0.6931472
    %v240 = vlog2.pop %v203
    %v241 = vmul.f32 %v240, 0.6931472
    %v242 = vlog2.pop %v206
    %v243 = vmul.f32 %v242, 0.6931472
    %v244 = vlog2.pop %v209
    %v245 = vmul.f32 %v244, 0.6931472
    %v246 = vlog2.pop %v212
    %v247 = vmul.f32 %v246, 0.6931472
    %v248 = vlog2.pop %v215
    %v249 = vmul.f32 %v248, 0.6931472
    %v250 = vlog2.pop %v218
    %v251 = vmul.f32 %v250, 0.6931472
    %v252 = vlog2.pop %v221
    %v253 = vmul.f32 %v252, 0.6931472
    %v254 = vlog2.pop %v224
    %v255 = vmul.f32 %v254, 0.6931472
    %v256 = vlog2.pop %v227
    %v257 = vmul.f32 %v256, 0.6931472
    %v258 = vlog2.pop %v230
    %v259 = vmul.f32 %v258, 0.6931472
    %v260 = vlog2.pop %v233
    %v261 = vmul.f32 %v260, 0.6931472
    %v262 = vadd.f32 %v110, %v235
    %v263 = vadd.f32 %v113, %v237
    %v264 = vadd.f32 %v116, %v239
    %v265 = vadd.f32 %v119, %v241
    %v266 = vadd.f32 %v122, %v243
    %v267 = vadd.f32 %v125, %v245
    %v268 = vadd.f32 %v128, %v247
    %v269 = vadd.f32 %v131, %v249
    %v270 = vadd.f32 %v134, %v251
    %v271 = vadd.f32 %v137, %v253
    %v272 = vadd.f32 %v140, %v255
    %v273 = vadd.f32 %v143, %v257
    %v274 = vadd.f32 %v146, %v259
    %v275 = vadd.f32 %v149, %v261
    %v276 = vsel %vm93, %v18, 0.0
    %v277 = vsel %vm94, %v19, 0.0
    %v278 = vsel %vm95, %v20, 0.0
    %v279 = vsel %vm96, %v21, 0.0
    %v280 = vsel %vm97, %v22, 0.0
    %v281 = vsel %vm98, %v23, 0.0
    %v282 = vsel %vm99, %v24, 0.0
    %v283 = vsel %vm100, %v25, 0.0
    %v284 = vsel %vm101, %v26, 0.0
    %v285 = vsel %vm102, %v27, 0.0
    %v286 = vsel %vm103, %v28, 0.0
    %v287 = vsel %vm104, %v29, 0.0
    %v288 = vsel %vm105, %v30, 0.0
    %v289 = vsel %vm106, %v31, 0.0
    %v290 = vsel %vm107, %v276, 0.0
    %291 = vadd.xlane.f32.xlu0 %v290
    %v292 = vpop.xlane.xlu0 %291
    %v293 = vsel %vm107, %v277, 0.0
    %294 = vadd.xlane.f32.xlu0 %v293
    %v295 = vpop.xlane.xlu0 %294
    %v296 = vsel %vm107, %v278, 0.0
    %297 = vadd.xlane.f32.xlu0 %v296
    %v298 = vpop.xlane.xlu0 %297
    %v299 = vsel %vm107, %v279, 0.0
    %300 = vadd.xlane.f32.xlu0 %v299
    %v301 = vpop.xlane.xlu0 %300
    %v302 = vsel %vm107, %v280, 0.0
    %303 = vadd.xlane.f32.xlu0 %v302
    %v304 = vpop.xlane.xlu0 %303
    %v305 = vsel %vm107, %v281, 0.0
    %306 = vadd.xlane.f32.xlu0 %v305
    %v307 = vpop.xlane.xlu0 %306
    %v308 = vsel %vm107, %v282, 0.0
    %309 = vadd.xlane.f32.xlu0 %v308
    %v310 = vpop.xlane.xlu0 %309
    %v311 = vsel %vm107, %v283, 0.0
    %312 = vadd.xlane.f32.xlu0 %v311
    %v313 = vpop.xlane.xlu0 %312
    %v314 = vsel %vm107, %v284, 0.0
    %315 = vadd.xlane.f32.xlu0 %v314
    %v316 = vpop.xlane.xlu0 %315
    %v317 = vsel %vm107, %v285, 0.0
    %318 = vadd.xlane.f32.xlu0 %v317
    %v319 = vpop.xlane.xlu0 %318
    %v320 = vsel %vm107, %v286, 0.0
    %321 = vadd.xlane.f32.xlu0 %v320
    %v322 = vpop.xlane.xlu0 %321
    %v323 = vsel %vm107, %v287, 0.0
    %324 = vadd.xlane.f32.xlu0 %v323
    %v325 = vpop.xlane.xlu0 %324
    %v326 = vsel %vm107, %v288, 0.0
    %327 = vadd.xlane.f32.xlu0 %v326
    %v328 = vpop.xlane.xlu0 %327
    %v329 = vsel %vm107, %v289, 0.0
    %330 = vadd.xlane.f32.xlu0 %v329
    %v331 = vpop.xlane.xlu0 %330
    %332 = vxpose.xlu0.b32.start [1/16] %v262, 128
    %333 = vxpose.xlu0.b32.cont [2/16] %v263, 128
    %334 = vxpose.xlu0.b32.cont [3/16] %v264, 128
    %335 = vxpose.xlu0.b32.cont [4/16] %v265, 128
    %336 = vxpose.xlu0.b32.cont [5/16] %v266, 128
    %337 = vxpose.xlu0.b32.cont [6/16] %v267, 128
    %338 = vxpose.xlu0.b32.cont [7/16] %v268, 128
    %339 = vxpose.xlu0.b32.cont [8/16] %v269, 128
    %340 = vxpose.xlu0.b32.cont [9/16] %v270, 128
    %341 = vxpose.xlu0.b32.cont [10/16] %v271, 128
    %342 = vxpose.xlu0.b32.cont [11/16] %v272, 128
    %343 = vxpose.xlu0.b32.cont [12/16] %v273, 128
    %344 = vxpose.xlu0.b32.cont [13/16] %v274, 128
    %345 = vxpose.xlu0.b32.cont [14/16] %v275, 128
    %346 = vxpose.xlu0.b32.cont [15/16] 0.0, 128
    %347 = vxpose.xlu0.b32.end [16/16] 0.0, 128
    %v348 = vpop.trf.xlu0
    %v349 = vpop.trf.xlu0
    %v350 = vpop.trf.xlu0
    %v351 = vpop.trf.xlu0
    %v352 = vpop.trf.xlu0
    %v353 = vpop.trf.xlu0
    %v354 = vpop.trf.xlu0
    %v355 = vpop.trf.xlu0
    %v356 = vpop.trf.xlu0
    %v357 = vpop.trf.xlu0
    %v358 = vpop.trf.xlu0
    %v359 = vpop.trf.xlu0
    %v360 = vpop.trf.xlu0
    %v361 = vpop.trf.xlu0
    %v362 = vpop.trf.xlu0
    %v363 = vpop.trf.xlu0
    %vm364 = vcmask 909312
    %365 = vst.msk [vmem:[#allocation2] sm:$0x1] %vm364, %v348
    %366 = vxpose.xlu0.b32.start [1/16] %v292, 128
    %367 = vxpose.xlu0.b32.cont [2/16] %v295, 128
    %368 = vxpose.xlu0.b32.cont [3/16] %v298, 128
    %369 = vxpose.xlu0.b32.cont [4/16] %v301, 128
    %370 = vxpose.xlu0.b32.cont [5/16] %v304, 128
    %371 = vxpose.xlu0.b32.cont [6/16] %v307, 128
    %372 = vxpose.xlu0.b32.cont [7/16] %v310, 128
    %373 = vxpose.xlu0.b32.cont [8/16] %v313, 128
    %374 = vxpose.xlu0.b32.cont [9/16] %v316, 128
    %375 = vxpose.xlu0.b32.cont [10/16] %v319, 128
    %376 = vxpose.xlu0.b32.cont [11/16] %v322, 128
    %377 = vxpose.xlu0.b32.cont [12/16] %v325, 128
    %378 = vxpose.xlu0.b32.cont [13/16] %v328, 128
    %379 = vxpose.xlu0.b32.cont [14/16] %v331, 128
    %380 = vxpose.xlu0.b32.cont [15/16] 0.0, 128
    %381 = vxpose.xlu0.b32.end [16/16] 0.0, 128
    %v382 = vpop.trf.xlu0
    %v383 = vpop.trf.xlu0
    %v384 = vpop.trf.xlu0
    %v385 = vpop.trf.xlu0
    %v386 = vpop.trf.xlu0
    %v387 = vpop.trf.xlu0
    %v388 = vpop.trf.xlu0
    %v389 = vpop.trf.xlu0
    %v390 = vpop.trf.xlu0
    %v391 = vpop.trf.xlu0
    %v392 = vpop.trf.xlu0
    %v393 = vpop.trf.xlu0
    %v394 = vpop.trf.xlu0
    %v395 = vpop.trf.xlu0
    %v396 = vpop.trf.xlu0
    %v397 = vpop.trf.xlu0
    %398 = vst.msk [vmem:[#allocation4] sm:$0x1] %vm364, %v382
    // Predicated region
    $region14: #{tpu_custom_call.1} parent=1 // pred_check
      _
    $region15: #{tpu_custom_call.1} parent=1 // pred_check_branch
      %400 = sbr.rel (0) target = $region17
    $region16: #{tpu_custom_call.1} parent=1 // pred_region
      %s402 = ssub.s32 16, 16
      %403 = vsyncadd [#allocation3], %s402
      %s405 = sshll.u32 [#allocation2], 4
      %s406 = int_to_ptr.vmem [resolvable:$true] %s405
      %408 = dma.vmem_to_hbm [thread:$0]  %s406, 16, %s3, [#allocation3]
    $region17: #{tpu_custom_call.1} parent=1 // pred_fallthru
      _
    // Predicated region
    $region18: #{tpu_custom_call.1} parent=1 // pred_check
      _
    $region19: #{tpu_custom_call.1} parent=1 // pred_check_branch
      %410 = sbr.rel (0) target = $region21
    $region20: #{tpu_custom_call.1} parent=1 // pred_region
      %s412 = ssub.s32 16, 16
      %413 = vsyncadd [#allocation5], %s412
      %s415 = sshll.u32 [#allocation4], 4
      %s416 = int_to_ptr.vmem [resolvable:$true] %s415
      %418 = dma.vmem_to_hbm [thread:$0]  %s416, 16, %s4, [#allocation5]
    $region21: #{tpu_custom_call.1} parent=1 // pred_fallthru
      _
    // Predicated region
    $region22: #{tpu_custom_call.1} parent=1 // pred_check
      _
    $region23: #{tpu_custom_call.1} parent=1 // pred_check_branch
      %420 = sbr.rel (0) target = $region25
    $region24: #{tpu_custom_call.1} parent=1 // pred_region
      %421 = dma.done [#allocation3], 16
    $region25: #{tpu_custom_call.1} parent=1 // pred_fallthru
      _
    // Predicated region
    $region26: #{tpu_custom_call.1} parent=1 // pred_check
      _
    $region27: #{tpu_custom_call.1} parent=1 // pred_check_branch
      %423 = sbr.rel (0) target = $region29
    $region28: #{tpu_custom_call.1} parent=1 // pred_region
      %424 = dma.done [#allocation5], 16
    $region29: #{tpu_custom_call.1} parent=1 // pred_fallthru
      _
    %425 = vsyncpa [#allocation3], 1
    %426 = vsyncpa [#allocation5], 1

// kernel: tpu_custom_call.1
$region0: #{tpu_custom_call.1}
  #allocation0 [shape = 'u32[]', space=smem, size = 0x4, offset = 0x4, fixed_abs, tag = 'smem constant byte address 0x4 - core index']
  #allocation1 [shape = 'u32[144,128]{1,0:T(1,128)}', space=vmem, size = 0x12000, scoped, tag = 'internal scratch']
  %s0 = inlined_call_operand.vmem [shape: f32[1,100,32], index: 0, kind: input, shape index: {}]
  %s1 = inlined_call_operand.vmem [shape: s32[100,1], index: 1, kind: input, shape index: {}]
  %s2 = inlined_call_operand.vmem [shape: s32[1,32], index: 2, kind: input, shape index: {}]
  %s3 = inlined_call_operand.vmem [shape: f32[1,112,1], index: 3, kind: output, shape index: {0}]
  %s4 = inlined_call_operand.vmem [shape: f32[1,112,1], index: 4, kind: output, shape index: {1}]
  %5 = xla_tuple %s3, %s4
  %s6 = sld [smem:[#allocation0]]
  $region30: #{tpu_custom_call.1} parent=0
    _
  %s8 = ssub.s32 1, %s6
  %s9 = scalar_select 0, %s8, %s6
  // Predicated region
  $region2: #{tpu_custom_call.1} parent=0 // pred_check
    _
  $region3: #{tpu_custom_call.1} parent=0 // pred_check_branch
    %11 = sbr.rel (0) target = $region5
  $region4: #{tpu_custom_call.1} parent=0 // pred_region
    _
  $region5: #{tpu_custom_call.1} parent=0 // pred_fallthru
    _
  // Predicated region
  $region6: #{tpu_custom_call.1} parent=0 // pred_check
    _
  $region7: #{tpu_custom_call.1} parent=0 // pred_check_branch
    %13 = sbr.rel (0) target = $region9
  $region8: #{tpu_custom_call.1} parent=0 // pred_region
    _
  $region9: #{tpu_custom_call.1} parent=0 // pred_fallthru
    _
  // Predicated region
  $region10: #{tpu_custom_call.1} parent=0 // pred_check
    _
  $region11: #{tpu_custom_call.1} parent=0 // pred_check_branch
    %15 = sbr.rel (0) target = $region13
  $region12: #{tpu_custom_call.1} parent=0 // pred_region
    _
  $region13: #{tpu_custom_call.1} parent=0 // pred_fallthru
    _
  %v16 = vld [vmem:[%s0] sm:$0xff]
  %v17 = vld [vmem:[%s0 + $0x8] sm:$0xff]
  %v18 = vld [vmem:[%s0 + $0x10] sm:$0xff]
  %v19 = vld [vmem:[%s0 + $0x18] sm:$0xff]
  %v20 = vld [vmem:[%s0 + $0x20] sm:$0xff]
  %v21 = vld [vmem:[%s0 + $0x28] sm:$0xff]
  %v22 = vld [vmem:[%s0 + $0x30] sm:$0xff]
  %v23 = vld [vmem:[%s0 + $0x38] sm:$0xff]
  %v24 = vld [vmem:[%s0 + $0x40] sm:$0xff]
  %v25 = vld [vmem:[%s0 + $0x48] sm:$0xff]
  %v26 = vld [vmem:[%s0 + $0x50] sm:$0xff]
  %v27 = vld [vmem:[%s0 + $0x58] sm:$0xff]
  %v28 = vld [vmem:[%s0 + $0x60] sm:$0xff]
  %v29 = vld [vmem:[%s0 + $0x68] sm:$0xff]
  %v30 = vld [vmem:[%s2] sm:$0x1]
  %v31 = vld [vmem:[%s1] sm:$0xff]
  %v32 = vld [vmem:[%s1 + $0x8] sm:$0xff]
  %v33 = vld [vmem:[%s1 + $0x10] sm:$0xff]
  %v34 = vld [vmem:[%s1 + $0x18] sm:$0xff]
  %v35 = vld [vmem:[%s1 + $0x20] sm:$0xff]
  %v36 = vld [vmem:[%s1 + $0x28] sm:$0xff]
  %v37 = vld [vmem:[%s1 + $0x30] sm:$0xff]
  %v38 = vld [vmem:[%s1 + $0x38] sm:$0xff]
  %v39 = vld [vmem:[%s1 + $0x40] sm:$0xff]
  %v40 = vld [vmem:[%s1 + $0x48] sm:$0xff]
  %v41 = vld [vmem:[%s1 + $0x50] sm:$0xff]
  %v42 = vld [vmem:[%s1 + $0x58] sm:$0xff]
  %v43 = vld [vmem:[%s1 + $0x60] sm:$0xff]
  %v44 = vld [vmem:[%s1 + $0x68] sm:$0xff]
  %v45 = vlaneseq
  %v46 = vshrl.u32 %v45, 7
  %v47 = vsub.s32 0, %v46
  %v48 = vrot.slane %v30, %v47
  %49 = vset.pattern.permute.xlu0 0
  %50 = vperm.xlu0 %49, %v31
  %v51 = vpop.permute.xlu0 %50
  %52 = vset.pattern.permute.xlu0 0
  %53 = vperm.xlu0 %52, %v32
  %v54 = vpop.permute.xlu0 %53
  %55 = vset.pattern.permute.xlu0 0
  %56 = vperm.xlu0 %55, %v33
  %v57 = vpop.permute.xlu0 %56
  %58 = vset.pattern.permute.xlu0 0
  %59 = vperm.xlu0 %58, %v34
  %v60 = vpop.permute.xlu0 %59
  %61 = vset.pattern.permute.xlu0 0
  %62 = vperm.xlu0 %61, %v35
  %v63 = vpop.permute.xlu0 %62
  %64 = vset.pattern.permute.xlu0 0
  %65 = vperm.xlu0 %64, %v36
  %v66 = vpop.permute.xlu0 %65
  %67 = vset.pattern.permute.xlu0 0
  %68 = vperm.xlu0 %67, %v37
  %v69 = vpop.permute.xlu0 %68
  %70 = vset.pattern.permute.xlu0 0
  %71 = vperm.xlu0 %70, %v38
  %v72 = vpop.permute.xlu0 %71
  %73 = vset.pattern.permute.xlu0 0
  %74 = vperm.xlu0 %73, %v39
  %v75 = vpop.permute.xlu0 %74
  %76 = vset.pattern.permute.xlu0 0
  %77 = vperm.xlu0 %76, %v40
  %v78 = vpop.permute.xlu0 %77
  %79 = vset.pattern.permute.xlu0 0
  %80 = vperm.xlu0 %79, %v41
  %v81 = vpop.permute.xlu0 %80
  %82 = vset.pattern.permute.xlu0 0
  %83 = vperm.xlu0 %82, %v42
  %v84 = vpop.permute.xlu0 %83
  %85 = vset.pattern.permute.xlu0 0
  %86 = vperm.xlu0 %85, %v43
  %v87 = vpop.permute.xlu0 %86
  %88 = vset.pattern.permute.xlu0 0
  %89 = vperm.xlu0 %88, %v44
  %v90 = vpop.permute.xlu0 %89
  %vm91 = vcmp.eq.s32.totalorder %v48, %v51
  %vm92 = vcmp.eq.s32.totalorder %v48, %v54
  %vm93 = vcmp.eq.s32.totalorder %v48, %v57
  %vm94 = vcmp.eq.s32.totalorder %v48, %v60
  %vm95 = vcmp.eq.s32.totalorder %v48, %v63
  %vm96 = vcmp.eq.s32.totalorder %v48, %v66
  %vm97 = vcmp.eq.s32.totalorder %v48, %v69
  %vm98 = vcmp.eq.s32.totalorder %v48, %v72
  %vm99 = vcmp.eq.s32.totalorder %v48, %v75
  %vm100 = vcmp.eq.s32.totalorder %v48, %v78
  %vm101 = vcmp.eq.s32.totalorder %v48, %v81
  %vm102 = vcmp.eq.s32.totalorder %v48, %v84
  %vm103 = vcmp.eq.s32.totalorder %v48, %v87
  %vm104 = vcmp.eq.s32.totalorder %v48, %v90
  %vm105 = vcmask 261120
  %v106 = vsel %vm105, %v16, -inf
  %107 = vmax.xlane.f32.xlu0 %v106
  %v108 = vpop.xlane.xlu0 %107
  %v109 = vsel %vm105, %v17, -inf
  %110 = vmax.xlane.f32.xlu0 %v109
  %v111 = vpop.xlane.xlu0 %110
  %v112 = vsel %vm105, %v18, -inf
  %113 = vmax.xlane.f32.xlu0 %v112
  %v114 = vpop.xlane.xlu0 %113
  %v115 = vsel %vm105, %v19, -inf
  %116 = vmax.xlane.f32.xlu0 %v115
  %v117 = vpop.xlane.xlu0 %116
  %v118 = vsel %vm105, %v20, -inf
  %119 = vmax.xlane.f32.xlu0 %v118
  %v120 = vpop.xlane.xlu0 %119
  %v121 = vsel %vm105, %v21, -inf
  %122 = vmax.xlane.f32.xlu0 %v121
  %v123 = vpop.xlane.xlu0 %122
  %v124 = vsel %vm105, %v22, -inf
  %125 = vmax.xlane.f32.xlu0 %v124
  %v126 = vpop.xlane.xlu0 %125
  %v127 = vsel %vm105, %v23, -inf
  %128 = vmax.xlane.f32.xlu0 %v127
  %v129 = vpop.xlane.xlu0 %128
  %v130 = vsel %vm105, %v24, -inf
  %131 = vmax.xlane.f32.xlu0 %v130
  %v132 = vpop.xlane.xlu0 %131
  %v133 = vsel %vm105, %v25, -inf
  %134 = vmax.xlane.f32.xlu0 %v133
  %v135 = vpop.xlane.xlu0 %134
  %v136 = vsel %vm105, %v26, -inf
  %137 = vmax.xlane.f32.xlu0 %v136
  %v138 = vpop.xlane.xlu0 %137
  %v139 = vsel %vm105, %v27, -inf
  %140 = vmax.xlane.f32.xlu0 %v139
  %v141 = vpop.xlane.xlu0 %140
  %v142 = vsel %vm105, %v28, -inf
  %143 = vmax.xlane.f32.xlu0 %v142
  %v144 = vpop.xlane.xlu0 %143
  %v145 = vsel %vm105, %v29, -inf
  %146 = vmax.xlane.f32.xlu0 %v145
  %v147 = vpop.xlane.xlu0 %146
  %v148 = vsub.f32 %v16, %v108
  %v149 = vsub.f32 %v17, %v111
  %v150 = vsub.f32 %v18, %v114
  %v151 = vsub.f32 %v19, %v117
  %v152 = vsub.f32 %v20, %v120
  %v153 = vsub.f32 %v21, %v123
  %v154 = vsub.f32 %v22, %v126
  %v155 = vsub.f32 %v23, %v129
  %v156 = vsub.f32 %v24, %v132
  %v157 = vsub.f32 %v25, %v135
  %v158 = vsub.f32 %v26, %v138
  %v159 = vsub.f32 %v27, %v141
  %v160 = vsub.f32 %v28, %v144
  %v161 = vsub.f32 %v29, %v147
  %v162 = vmul.f32 %v148, 1.442695
  %v163 = vpow.pop %v162
  %v164 = vmul.f32 %v149, 1.442695
  %v165 = vpow.pop %v164
  %v166 = vmul.f32 %v150, 1.442695
  %v167 = vpow.pop %v166
  %v168 = vmul.f32 %v151, 1.442695
  %v169 = vpow.pop %v168
  %v170 = vmul.f32 %v152, 1.442695
  %v171 = vpow.pop %v170
  %v172 = vmul.f32 %v153, 1.442695
  %v173 = vpow.pop %v172
  %v174 = vmul.f32 %v154, 1.442695
  %v175 = vpow.pop %v174
  %v176 = vmul.f32 %v155, 1.442695
  %v177 = vpow.pop %v176
  %v178 = vmul.f32 %v156, 1.442695
  %v179 = vpow.pop %v178
  %v180 = vmul.f32 %v157, 1.442695
  %v181 = vpow.pop %v180
  %v182 = vmul.f32 %v158, 1.442695
  %v183 = vpow.pop %v182
  %v184 = vmul.f32 %v159, 1.442695
  %v185 = vpow.pop %v184
  %v186 = vmul.f32 %v160, 1.442695
  %v187 = vpow.pop %v186
  %v188 = vmul.f32 %v161, 1.442695
  %v189 = vpow.pop %v188
  %v190 = vsel %vm105, %v163, 0.0
  %191 = vadd.xlane.f32.xlu0 %v190
  %v192 = vpop.xlane.xlu0 %191
  %v193 = vsel %vm105, %v165, 0.0
  %194 = vadd.xlane.f32.xlu0 %v193
  %v195 = vpop.xlane.xlu0 %194
  %v196 = vsel %vm105, %v167, 0.0
  %197 = vadd.xlane.f32.xlu0 %v196
  %v198 = vpop.xlane.xlu0 %197
  %v199 = vsel %vm105, %v169, 0.0
  %200 = vadd.xlane.f32.xlu0 %v199
  %v201 = vpop.xlane.xlu0 %200
  %v202 = vsel %vm105, %v171, 0.0
  %203 = vadd.xlane.f32.xlu0 %v202
  %v204 = vpop.xlane.xlu0 %203
  %v205 = vsel %vm105, %v173, 0.0
  %206 = vadd.xlane.f32.xlu0 %v205
  %v207 = vpop.xlane.xlu0 %206
  %v208 = vsel %vm105, %v175, 0.0
  %209 = vadd.xlane.f32.xlu0 %v208
  %v210 = vpop.xlane.xlu0 %209
  %v211 = vsel %vm105, %v177, 0.0
  %212 = vadd.xlane.f32.xlu0 %v211
  %v213 = vpop.xlane.xlu0 %212
  %v214 = vsel %vm105, %v179, 0.0
  %215 = vadd.xlane.f32.xlu0 %v214
  %v216 = vpop.xlane.xlu0 %215
  %v217 = vsel %vm105, %v181, 0.0
  %218 = vadd.xlane.f32.xlu0 %v217
  %v219 = vpop.xlane.xlu0 %218
  %v220 = vsel %vm105, %v183, 0.0
  %221 = vadd.xlane.f32.xlu0 %v220
  %v222 = vpop.xlane.xlu0 %221
  %v223 = vsel %vm105, %v185, 0.0
  %224 = vadd.xlane.f32.xlu0 %v223
  %v225 = vpop.xlane.xlu0 %224
  %v226 = vsel %vm105, %v187, 0.0
  %227 = vadd.xlane.f32.xlu0 %v226
  %v228 = vpop.xlane.xlu0 %227
  %v229 = vsel %vm105, %v189, 0.0
  %230 = vadd.xlane.f32.xlu0 %v229
  %v231 = vpop.xlane.xlu0 %230
  %v232 = vlog2.pop %v192
  %v233 = vmul.f32 %v232, 0.6931472
  %v234 = vlog2.pop %v195
  %v235 = vmul.f32 %v234, 0.6931472
  %v236 = vlog2.pop %v198
  %v237 = vmul.f32 %v236, 0.6931472
  %v238 = vlog2.pop %v201
  %v239 = vmul.f32 %v238, 0.6931472
  %v240 = vlog2.pop %v204
  %v241 = vmul.f32 %v240, 0.6931472
  %v242 = vlog2.pop %v207
  %v243 = vmul.f32 %v242, 0.6931472
  %v244 = vlog2.pop %v210
  %v245 = vmul.f32 %v244, 0.6931472
  %v246 = vlog2.pop %v213
  %v247 = vmul.f32 %v246, 0.6931472
  %v248 = vlog2.pop %v216
  %v249 = vmul.f32 %v248, 0.6931472
  %v250 = vlog2.pop %v219
  %v251 = vmul.f32 %v250, 0.6931472
  %v252 = vlog2.pop %v222
  %v253 = vmul.f32 %v252, 0.6931472
  %v254 = vlog2.pop %v225
  %v255 = vmul.f32 %v254, 0.6931472
  %v256 = vlog2.pop %v228
  %v257 = vmul.f32 %v256, 0.6931472
  %v258 = vlog2.pop %v231
  %v259 = vmul.f32 %v258, 0.6931472
  %v260 = vadd.f32 %v108, %v233
  %v261 = vadd.f32 %v111, %v235
  %v262 = vadd.f32 %v114, %v237
  %v263 = vadd.f32 %v117, %v239
  %v264 = vadd.f32 %v120, %v241
  %v265 = vadd.f32 %v123, %v243
  %v266 = vadd.f32 %v126, %v245
  %v267 = vadd.f32 %v129, %v247
  %v268 = vadd.f32 %v132, %v249
  %v269 = vadd.f32 %v135, %v251
  %v270 = vadd.f32 %v138, %v253
  %v271 = vadd.f32 %v141, %v255
  %v272 = vadd.f32 %v144, %v257
  %v273 = vadd.f32 %v147, %v259
  %v274 = vsel %vm91, %v16, 0.0
  %v275 = vsel %vm92, %v17, 0.0
  %v276 = vsel %vm93, %v18, 0.0
  %v277 = vsel %vm94, %v19, 0.0
  %v278 = vsel %vm95, %v20, 0.0
  %v279 = vsel %vm96, %v21, 0.0
  %v280 = vsel %vm97, %v22, 0.0
  %v281 = vsel %vm98, %v23, 0.0
  %v282 = vsel %vm99, %v24, 0.0
  %v283 = vsel %vm100, %v25, 0.0
  %v284 = vsel %vm101, %v26, 0.0
  %v285 = vsel %vm102, %v27, 0.0
  %v286 = vsel %vm103, %v28, 0.0
  %v287 = vsel %vm104, %v29, 0.0
  %v288 = vsel %vm105, %v274, 0.0
  %289 = vadd.xlane.f32.xlu0 %v288
  %v290 = vpop.xlane.xlu0 %289
  %v291 = vsel %vm105, %v275, 0.0
  %292 = vadd.xlane.f32.xlu0 %v291
  %v293 = vpop.xlane.xlu0 %292
  %v294 = vsel %vm105, %v276, 0.0
  %295 = vadd.xlane.f32.xlu0 %v294
  %v296 = vpop.xlane.xlu0 %295
  %v297 = vsel %vm105, %v277, 0.0
  %298 = vadd.xlane.f32.xlu0 %v297
  %v299 = vpop.xlane.xlu0 %298
  %v300 = vsel %vm105, %v278, 0.0
  %301 = vadd.xlane.f32.xlu0 %v300
  %v302 = vpop.xlane.xlu0 %301
  %v303 = vsel %vm105, %v279, 0.0
  %304 = vadd.xlane.f32.xlu0 %v303
  %v305 = vpop.xlane.xlu0 %304
  %v306 = vsel %vm105, %v280, 0.0
  %307 = vadd.xlane.f32.xlu0 %v306
  %v308 = vpop.xlane.xlu0 %307
  %v309 = vsel %vm105, %v281, 0.0
  %310 = vadd.xlane.f32.xlu0 %v309
  %v311 = vpop.xlane.xlu0 %310
  %v312 = vsel %vm105, %v282, 0.0
  %313 = vadd.xlane.f32.xlu0 %v312
  %v314 = vpop.xlane.xlu0 %313
  %v315 = vsel %vm105, %v283, 0.0
  %316 = vadd.xlane.f32.xlu0 %v315
  %v317 = vpop.xlane.xlu0 %316
  %v318 = vsel %vm105, %v284, 0.0
  %319 = vadd.xlane.f32.xlu0 %v318
  %v320 = vpop.xlane.xlu0 %319
  %v321 = vsel %vm105, %v285, 0.0
  %322 = vadd.xlane.f32.xlu0 %v321
  %v323 = vpop.xlane.xlu0 %322
  %v324 = vsel %vm105, %v286, 0.0
  %325 = vadd.xlane.f32.xlu0 %v324
  %v326 = vpop.xlane.xlu0 %325
  %v327 = vsel %vm105, %v287, 0.0
  %328 = vadd.xlane.f32.xlu0 %v327
  %v329 = vpop.xlane.xlu0 %328
  %vm330 = vcmask 7168
  %331 = vst.msk [vmem:[%s3] sm:$0xff] %vm330, %v260
  %332 = vst.msk [vmem:[%s3 + $0x8] sm:$0xff] %vm330, %v261
  %333 = vst.msk [vmem:[%s3 + $0x10] sm:$0xff] %vm330, %v262
  %334 = vst.msk [vmem:[%s3 + $0x18] sm:$0xff] %vm330, %v263
  %335 = vst.msk [vmem:[%s3 + $0x20] sm:$0xff] %vm330, %v264
  %336 = vst.msk [vmem:[%s3 + $0x28] sm:$0xff] %vm330, %v265
  %337 = vst.msk [vmem:[%s3 + $0x30] sm:$0xff] %vm330, %v266
  %338 = vst.msk [vmem:[%s3 + $0x38] sm:$0xff] %vm330, %v267
  %339 = vst.msk [vmem:[%s3 + $0x40] sm:$0xff] %vm330, %v268
  %340 = vst.msk [vmem:[%s3 + $0x48] sm:$0xff] %vm330, %v269
  %341 = vst.msk [vmem:[%s3 + $0x50] sm:$0xff] %vm330, %v270
  %342 = vst.msk [vmem:[%s3 + $0x58] sm:$0xff] %vm330, %v271
  %343 = vst.msk [vmem:[%s3 + $0x60] sm:$0xff] %vm330, %v272
  %344 = vst.msk [vmem:[%s3 + $0x68] sm:$0xff] %vm330, %v273
  %345 = vst.msk [vmem:[%s4] sm:$0xff] %vm330, %v290
  %346 = vst.msk [vmem:[%s4 + $0x8] sm:$0xff] %vm330, %v293
  %347 = vst.msk [vmem:[%s4 + $0x10] sm:$0xff] %vm330, %v296
  %348 = vst.msk [vmem:[%s4 + $0x18] sm:$0xff] %vm330, %v299
  %349 = vst.msk [vmem:[%s4 + $0x20] sm:$0xff] %vm330, %v302
  %350 = vst.msk [vmem:[%s4 + $0x28] sm:$0xff] %vm330, %v305
  %351 = vst.msk [vmem:[%s4 + $0x30] sm:$0xff] %vm330, %v308
  %352 = vst.msk [vmem:[%s4 + $0x38] sm:$0xff] %vm330, %v311
  %353 = vst.msk [vmem:[%s4 + $0x40] sm:$0xff] %vm330, %v314
  %354 = vst.msk [vmem:[%s4 + $0x48] sm:$0xff] %vm330, %v317
  %355 = vst.msk [vmem:[%s4 + $0x50] sm:$0xff] %vm330, %v320
  %356 = vst.msk [vmem:[%s4 + $0x58] sm:$0xff] %vm330, %v323
  %357 = vst.msk [vmem:[%s4 + $0x60] sm:$0xff] %vm330, %v326
  %358 = vst.msk [vmem:[%s4 + $0x68] sm:$0xff] %vm330, %v329
  // Predicated region
  $region14: #{tpu_custom_call.1} parent=0 // pred_check
    _
  $region15: #{tpu_custom_call.1} parent=0 // pred_check_branch
    %360 = sbr.rel (0) target = $region17
  $region16: #{tpu_custom_call.1} parent=0 // pred_region
    _
  $region17: #{tpu_custom_call.1} parent=0 // pred_fallthru
    _
  // Predicated region
  $region18: #{tpu_custom_call.1} parent=0 // pred_check
    _
  $region19: #{tpu_custom_call.1} parent=0 // pred_check_branch
    %362 = sbr.rel (0) target = $region21
  $region20: #{tpu_custom_call.1} parent=0 // pred_region
    _
  $region21: #{tpu_custom_call.1} parent=0 // pred_fallthru
    _
  // Predicated region
  $region22: #{tpu_custom_call.1} parent=0 // pred_check
    _
  $region23: #{tpu_custom_call.1} parent=0 // pred_check_branch
    %364 = sbr.rel (0) target = $region25
  $region24: #{tpu_custom_call.1} parent=0 // pred_region
    _
  $region25: #{tpu_custom_call.1} parent=0 // pred_fallthru
    _
  // Predicated region
  $region26: #{tpu_custom_call.1} parent=0 // pred_check
    _
  $region27: #{tpu_custom_call.1} parent=0 // pred_check_branch
    %366 = sbr.rel (0) target = $region29
  $region28: #{tpu_custom_call.1} parent=0 // pred_region
    _
  $region29: #{tpu_custom_call.1} parent=0 // pred_fallthru
    _

</llo_original>
